<compile_context>
chip_gen: v5e
topology: v5e:2x2
jax: 0.10.0
libtpu: 0.0.40
codegen_flags: <defaults>
</compile_context>

<pallas_src>
import jax
import jax.numpy as jnp
from jax.experimental import pallas as pl
from jax.experimental.pallas import tpu as pltpu


def _round_up(x: int, m: int) -> int:
    return ((x + m - 1) // m) * m


def _cdiv(a: int, b: int) -> int:
    return -(-a // b)


def _vmem_capacity_bytes() -> int:
    """Generation-aware VMEM capacity; conservative (v7x-sized) fallback."""
    try:
        info = pltpu.get_tpu_info()
        cap = getattr(info, "vmem_capacity_bytes", None)
        if cap:
            return int(cap)
    except Exception:
        pass
    return 64 << 20


def _choose_tm(m: int, h: int, itemsize: int, sublane: int, per_buf_budget: int) -> int:
    """Byte-targeted row tile: largest sublane-aligned TM (<=4096 rows) whose single
    VMEM-padded x buffer stays within per_buf_budget, without over-tiling tiny M.
    Nudges the tile count to be even so v7x's two TensorCores stay balanced."""
    row_bytes = max(1, _round_up(h, 128) * itemsize)      # VMEM-padded bytes per row
    tm = per_buf_budget // row_bytes
    tm = min(tm, 4096)                                     # generous row cap (small-H case)
    tm = min(tm, _round_up(m, sublane))                    # don't over-tile tiny problems
    tm = max(sublane, (tm // sublane) * sublane)
    n = _cdiv(m, tm)
    if n % 2 == 1:                                         # prefer an even tile count
        cand = _round_up(_cdiv(m, n + 1), sublane)
        if cand >= sublane and _cdiv(m, cand) % 2 == 0:
            tm = cand
    return tm


def _critic_kernel(x_ref, w_ref, b_ref, o_ref):
    # (TM, H) * (1, H) broadcast-multiply + lane reduce on the VPU/XLU, all in f32.
    # Exact f32 parity with the PyTorch module; compute is hidden under the x DMA.
    x = x_ref[...].astype(jnp.float32)                     # (TM, H)
    w = w_ref[...].astype(jnp.float32)                     # (1, H) lane-dense row
    acc = jnp.sum(x * w, axis=-1, keepdims=True)           # (TM, 1) f32
    o_ref[...] = (acc + b_ref[0, 0]).astype(o_ref.dtype)


def linear_critic_head(x, weight, bias):
    """x: (T, B, H); weight: (1, H) torch layout (f32); bias: (1,). Returns (T, B, 1)."""
    T, B, H = x.shape
    M = T * B
    x2 = x.reshape(M, H)                                   # free reshape (contiguous)
    w_row = weight.reshape(1, H).astype(jnp.float32)       # lane-dense, VMEM-resident
    b2 = bias.reshape(1, 1).astype(jnp.float32)            # scalar bias in SMEM

    itemsize = x2.dtype.itemsize
    out_itemsize = x.dtype.itemsize
    sublane = max(8, 32 // itemsize)                       # 8 f32 / 16 bf16 / 32 int8

    # Generation-aware budgets.
    cap = _vmem_capacity_bytes()
    if cap <= 80 << 20:                                    # v7x-class (64 MiB per TC)
        per_buf_budget, limit_cap = 12 << 20, 48 << 20
    else:                                                  # v5e / v6e (128 MiB)
        per_buf_budget, limit_cap = 20 << 20, 96 << 20

    tm = _choose_tm(M, H, itemsize, sublane, per_buf_budget)
    n_tiles = pl.cdiv(M, tm)                               # partial last block handled by Pallas

    # VMEM budget from (8,128)-padded buffer shapes (double-buffered), + headroom.
    h_pad = _round_up(H, 128)
    vmem_bytes = (2 * tm * h_pad * itemsize                # x tiles
                  + 2 * 8 * h_pad * 4                      # (1,H) f32 weight row (padded)
                  + 2 * tm * 128 * out_itemsize            # (TM,1) output (lane-padded)
                  + (2 << 20))                             # compiler scratch headroom
    vmem_bytes = int(min(max(vmem_bytes, 16 << 20), limit_cap))

    cost = pl.CostEstimate(
        flops=2 * M * H,
        bytes_accessed=M * H * itemsize + M * out_itemsize + H * 4 + 4,
        transcendentals=0,
    )

    out = pl.pallas_call(
        _critic_kernel,
        out_shape=jax.ShapeDtypeStruct((M, 1), x.dtype),
        grid=(n_tiles,),
        in_specs=[
            pl.BlockSpec((tm, H), lambda i: (i, 0)),       # activations: tiled over M
            pl.BlockSpec((1, H), lambda i: (0, 0)),        # weight row: VMEM-resident
            pl.BlockSpec(memory_space=pltpu.SMEM),         # scalar bias
        ],
        out_specs=pl.BlockSpec((tm, 1), lambda i: (i, 0)),
        compiler_params=pltpu.CompilerParams(
            dimension_semantics=("parallel",),             # megacore-shard M tiles on v7x
            vmem_limit_bytes=vmem_bytes,
        ),
        cost_estimate=cost,
    )(x2, w_row, b2)

    return out.reshape(T, B, 1)


def init_params(input_size, key):
    """Deterministic init matching nn.Linear(input_size, 1) with orthogonal_ weight
    and zero bias: an orthogonal (1, H) matrix is a unit-norm row vector."""
    w = jax.random.normal(key, (1, input_size), dtype=jnp.float32)
    w = w / jnp.sqrt(jnp.sum(w * w))
    b = jnp.zeros((1,), dtype=jnp.float32)
    return w, b


def _reference(x, weight, bias):
    T, B, H = x.shape
    xf = x.reshape(T * B, H).astype(jnp.float32)
    wf = weight.reshape(1, H).astype(jnp.float32)
    ref = jnp.sum(xf * wf, axis=-1, keepdims=True) + bias.astype(jnp.float32)
    return ref.reshape(T, B, 1).astype(x.dtype)


if __name__ == "__main__":
    key = jax.random.PRNGKey(0)
    k_x1, k_w1, k_x2, k_w2, k_x3, k_w3 = jax.random.split(key, 6)

    # 1) Primary small-shape check (single tile path): (T, B, H) = (2, 4, 32).
    T, B, H = 2, 4, 32
    x = jax.random.normal(k_x1, (T, B, H), dtype=jnp.float32)
    weight, bias = init_params(H, k_w1)
    out = jax.block_until_ready(linear_critic_head(x, weight, bias))
    assert out.shape == (T, B, 1), out.shape
    assert jnp.allclose(out, _reference(x, weight, bias), atol=1e-5, rtol=1e-5)

    # 2) Multi-tile grid + masked partial last block, no wrapper pad:
    #    M = 15 rows -> TM = 8, grid = 2, last tile has 7 valid rows.
    T2, B2, H2 = 3, 5, 32
    x2 = jax.random.normal(k_x2, (T2, B2, H2), dtype=jnp.float32)
    w2, b2 = init_params(H2, k_w2)
    out2 = jax.block_until_ready(linear_critic_head(x2, w2, b2))
    assert out2.shape == (T2, B2, 1), out2.shape
    assert jnp.allclose(out2, _reference(x2, w2, b2), atol=1e-5, rtol=1e-5)

    # 3) Larger check: M = 1000, H = 256 -> TM = 504 (even tile count for v7x),
    #    partial last block of 496 valid rows.
    T3, B3, H3 = 10, 100, 256
    x3 = jax.random.normal(k_x3, (T3, B3, H3), dtype=jnp.float32)
    w3, b3 = init_params(H3, k_w3)
    out3 = jax.block_until_ready(linear_critic_head(x3, w3, b3))
    assert out3.shape == (T3, B3, 1), out3.shape
    assert jnp.allclose(out3, _reference(x3, w3, b3), atol=1e-4, rtol=1e-4)

    print("KERNEL_OK")
</pallas_src>

<mosaic_0001>
module attributes {stable_mosaic.version = 11 : i64} {
  func.func @_critic_kernel(%arg0: i32, %arg1: memref<8x32xf32, #tpu.memory_space<vmem>>, %arg2: memref<1x32xf32, #tpu.memory_space<vmem>>, %arg3: memref<1x1xf32, #tpu.memory_space<smem>>, %arg4: memref<8x1xf32, #tpu.memory_space<vmem>>) attributes {dimension_semantics = [#tpu.dimension_semantics<parallel>], iteration_bounds = array<i64: 1>, scalar_prefetch = 0 : i64, scratch_operands = 0 : i64, tpu.core_type = #tpu.core_type<tc>, window_params = [{transform_indices = @transform_0, window_bounds = array<i64: 8, 32>}, {pipeline_mode = #tpu.pipeline_mode<synchronous>, transform_indices = @transform_1, window_bounds = array<i64: 1, 32>}, {transform_indices = @transform_2, window_bounds = array<i64: 1, 1>}, {transform_indices = @transform_3, window_bounds = array<i64: 8, 1>}]} {
    %c0 = arith.constant 0 : index
    %c0_0 = arith.constant 0 : index
    %0 = vector.load %arg1[%c0, %c0_0] : memref<8x32xf32, #tpu.memory_space<vmem>>, vector<8x32xf32>
    %c0_1 = arith.constant 0 : index
    %c0_2 = arith.constant 0 : index
    %1 = vector.load %arg2[%c0_1, %c0_2] : memref<1x32xf32, #tpu.memory_space<vmem>>, vector<1x32xf32>
    %2 = vector.broadcast %1 : vector<1x32xf32> to vector<8x32xf32>
    %3 = arith.mulf %0, %2 : vector<8x32xf32>
    %cst = arith.constant dense<0.000000e+00> : vector<8xf32>
    %4 = vector.multi_reduction <add>, %3, %cst [1] : vector<8x32xf32> to vector<8xf32>
    %5 = vector.shape_cast %4 : vector<8xf32> to vector<8x1xf32>
    %c0_3 = arith.constant 0 : index
    %c0_4 = arith.constant 0 : index
    %6 = memref.load %arg3[%c0_3, %c0_4] : memref<1x1xf32, #tpu.memory_space<smem>>
    %7 = vector.broadcast %6 : f32 to vector<8x1xf32>
    %8 = arith.addf %5, %7 : vector<8x1xf32>
    %c0_5 = arith.constant 0 : index
    %c0_6 = arith.constant 0 : index
    %9 = vector.load %arg4[%c0_5, %c0_6] : memref<8x1xf32, #tpu.memory_space<vmem>>, vector<8x1xf32>
    tpu.vector_store %arg4[%c0_5, %c0_6], %8 {strides = array<i32>} : memref<8x1xf32, #tpu.memory_space<vmem>>, vector<8x1xf32>,
    return
  }
  func.func @transform_0(%arg0: i32) -> (i32, i32) {
    %c0_i32 = arith.constant 0 : i32
    %c0_i32_0 = arith.constant 0 : i32
    return %arg0, %c0_i32 : i32, i32
  }
  func.func @transform_1(%arg0: i32) -> (i32, i32) {
    %c0_i32 = arith.constant 0 : i32
    %c0_i32_0 = arith.constant 0 : i32
    %c0_i32_1 = arith.constant 0 : i32
    return %c0_i32, %c0_i32_0 : i32, i32
  }
  func.func @transform_2(%arg0: i32) -> (i32, i32) {
    %c0_i32 = arith.constant 0 : i32
    %c0_i32_0 = arith.constant 0 : i32
    %c0_i32_1 = arith.constant 0 : i32
    return %c0_i32, %c0_i32_0 : i32, i32
  }
  func.func @transform_3(%arg0: i32) -> (i32, i32) {
    %c0_i32 = arith.constant 0 : i32
    %c0_i32_0 = arith.constant 0 : i32
    return %arg0, %c0_i32 : i32, i32
  }
}

</mosaic_0001>

<llo_original>
// kernel: tpu_custom_call.1
$region0: #{tpu_custom_call.1}
  #allocation0 [shape = 'u32[]', space=smem, size = 0x4, offset = 0x4, fixed_abs, tag = 'smem constant byte address 0x4 - core index']
  #allocation1 [shape = 'u32[72,128]{1,0:T(1,128)}', space=vmem, size = 0x9000, scoped, tag = 'internal scratch']
  #allocation2 [shape = 'f32[1,1]{1,0:T(1,128)S(6)}', space=smem, size = 0x200, scoped, tag = 'scoped memory for tpu_custom_call.1']
  %s0 = inlined_call_operand.hbm [shape: f32[8,32], index: 0, kind: input, shape index: {}]
  %s1 = inlined_call_operand.vmem [shape: f32[1,32], index: 1, kind: input, shape index: {}]
  %s2 = inlined_call_operand.<no memory space> [shape: f32[1,1], index: 2, kind: input, shape index: {}]
  %s3 = inlined_call_operand.vmem [shape: f32[8,1], index: 3, kind: output, shape index: {}]
  %s4 = sld [smem:[#allocation0]]
  $region26: #{tpu_custom_call.1} parent=0
    _
  %s6 = ssub.s32 1, %s4
  %s7 = scalar_select 0, %s6, %s4
  %8 = sst [smem:[#allocation2]] %s2
  $region1: #{tpu_custom_call.1} parent=0
    #allocation3 [shape = 'u8[4096]{0}', space=vmem, size = 0x1000, scoped, tag = 'input window, operand 0, single buffered']
    #allocation4 [shape = 's32[1]{0}', space=sflag, size = 0x4, scoped, tag = 'scoped memory for tpu_custom_call.1']
    %9 = vsyncpa [#allocation4], 0
    // Predicated region
    $region2: #{tpu_custom_call.1} parent=1 // pred_check
      _
    $region3: #{tpu_custom_call.1} parent=1 // pred_check_branch
      %11 = sbr.rel (0) target = $region5
    $region4: #{tpu_custom_call.1} parent=1 // pred_region
      %13 = vsyncadd [#allocation4], 0
      %s15 = sshll.u32 %s0, 4
      %s16 = int_to_ptr.hbm [resolvable:$true] %s15
      %s17 = sshll.u32 [#allocation3], 4
      %s18 = int_to_ptr.vmem [resolvable:$true] %s17
      %20 = dma.hbm_to_vmem [thread:$0]  %s16, 128, %s18, [#allocation4]
    $region5: #{tpu_custom_call.1} parent=1 // pred_fallthru
      _
    // Predicated region
    $region6: #{tpu_custom_call.1} parent=1 // pred_check
      _
    $region7: #{tpu_custom_call.1} parent=1 // pred_check_branch
      %22 = sbr.rel (0) target = $region9
    $region8: #{tpu_custom_call.1} parent=1 // pred_region
      _
    $region9: #{tpu_custom_call.1} parent=1 // pred_fallthru
      _
    // Predicated region
    $region10: #{tpu_custom_call.1} parent=1 // pred_check
      _
    $region11: #{tpu_custom_call.1} parent=1 // pred_check_branch
      %24 = sbr.rel (0) target = $region13
    $region12: #{tpu_custom_call.1} parent=1 // pred_region
      _
    $region13: #{tpu_custom_call.1} parent=1 // pred_fallthru
      _
    // Predicated region
    $region14: #{tpu_custom_call.1} parent=1 // pred_check
      _
    $region15: #{tpu_custom_call.1} parent=1 // pred_check_branch
      %26 = sbr.rel (0) target = $region17
    $region16: #{tpu_custom_call.1} parent=1 // pred_region
      %28 = dma.done [#allocation4], 128
    $region17: #{tpu_custom_call.1} parent=1 // pred_fallthru
      _
    %v29 = vld [vmem:[#allocation3] sm:$0xff]
    %v30 = vld [vmem:[%s1] sm:$0x1]
    %v32 = vperm.slane %v30, 0
    %v34 = vmul.f32 %v29, %v32
    %vm35 = vcmask 261120
    %v36 = vsel %vm35, %v34, 0.0
    %37 = vadd.xlane.f32.xlu0 %v36
    %v38 = vpop.xlane.xlu0 %37
    %s39 = sld [smem:[#allocation2]]
    %v40 = vstv %s39
    %v41 = vadd.f32 %v38, %v40
    %vm42 = vcmask 7168
    %43 = vst.msk [vmem:[%s3] sm:$0xff] %vm42, %v41
    // Predicated region
    $region18: #{tpu_custom_call.1} parent=1 // pred_check
      _
    $region19: #{tpu_custom_call.1} parent=1 // pred_check_branch
      %45 = sbr.rel (0) target = $region21
    $region20: #{tpu_custom_call.1} parent=1 // pred_region
      _
    $region21: #{tpu_custom_call.1} parent=1 // pred_fallthru
      _
    // Predicated region
    $region22: #{tpu_custom_call.1} parent=1 // pred_check
      _
    $region23: #{tpu_custom_call.1} parent=1 // pred_check_branch
      %47 = sbr.rel (0) target = $region25
    $region24: #{tpu_custom_call.1} parent=1 // pred_region
      _
    $region25: #{tpu_custom_call.1} parent=1 // pred_fallthru
      _
    %48 = vsyncpa [#allocation4], 1

</llo_original>
